<compile_context>
chip_gen: v7x
topology: tpu7x:2x2x1
jax: 0.10.0
libtpu: 0.0.40
codegen_flags: <defaults>
</compile_context>

<pallas_src>
import functools
from typing import List, Optional, Sequence, Tuple

import jax
import jax.numpy as jnp
from jax.experimental import pallas as pl
from jax.experimental.pallas import tpu as pltpu


# ------------------------------- helpers ----------------------------------- #

def _round_up(x: int, m: int) -> int:
    return ((x + m - 1) // m) * m


def _sublane_align(dtype) -> int:
    # Minimum second-to-last tile dim: 8 for 32-bit, 16 for bf16, 32 for int8.
    bits = jnp.dtype(dtype).itemsize * 8
    return max(8, 256 // bits)


def _choose_tile(total: int, cap: int, align: int) -> Tuple[int, int]:
    """Return (padded_total, tile) with tile | padded_total and tile % align == 0."""
    padded = _round_up(total, align)
    if padded <= cap:
        return padded, padded
    return _round_up(total, cap), cap


# ----------------------------- Pallas kernel ------------------------------- #

def _fused_linear_kernel(x_ref, w_ref, b_ref, o_ref):
    # x: (TM, K_pad), w: (K_pad, TN), b: (1, TN)  ->  o: (TM, TN)
    acc = jnp.dot(x_ref[...], w_ref[...], preferred_element_type=jnp.float32)
    o_ref[...] = (acc + b_ref[...]).astype(o_ref.dtype)


@functools.partial(jax.jit, static_argnames=("shapes", "out_feats"))
def _equivariant_forward(blocks, w_packed, b_packed, *, shapes, out_feats):
    """Fused forward: pack -> one pallas_call over (block, col-tile, row-tile) -> unpack."""
    B, K_pad, N_pad = w_packed.shape
    compute_dtype = w_packed.dtype
    align = _sublane_align(compute_dtype)

    rows = [s * c for (s, c, _k) in shapes]
    M_pad, tm = _choose_tile(max(rows), cap=128, align=align)
    # N_pad was built at init as a multiple of 128 (and of 512 when > 512).
    tn = N_pad if N_pad <= 512 else 512

    # Pack all block inputs into one zero-padded (B, M_pad, K_pad) operand.
    # Zero padding in K is absorbed by the zero-padded weight rows, so the
    # matmul result is exact on the valid region.
    x_packed = jnp.zeros((B, M_pad, K_pad), dtype=compute_dtype)
    for i, x in enumerate(blocks):
        s, c, k = shapes[i]
        x_packed = x_packed.at[i, : s * c, :k].set(
            x.reshape(s * c, k).astype(compute_dtype)
        )

    # Grid: (block, N tiles, M tiles). M tiles innermost so the weight block
    # (which does not depend on the row tile) stays resident across them.
    grid = (B, N_pad // tn, M_pad // tm)
    out = pl.pallas_call(
        _fused_linear_kernel,
        out_shape=jax.ShapeDtypeStruct((B, M_pad, N_pad), compute_dtype),
        grid=grid,
        in_specs=[
            pl.BlockSpec((None, tm, K_pad), lambda b, n, r: (b, r, 0)),
            pl.BlockSpec((None, K_pad, tn), lambda b, n, r: (b, 0, n)),
            pl.BlockSpec((None, 1, tn), lambda b, n, r: (b, 0, n)),
        ],
        out_specs=pl.BlockSpec((None, tm, tn), lambda b, n, r: (b, r, n)),
        compiler_params=pltpu.CompilerParams(
            dimension_semantics=("parallel", "parallel", "parallel")),
    )(x_packed, w_packed, b_packed)

    outs = []
    for i, (s, c, _k) in enumerate(shapes):
        n = out_feats[i]
        outs.append(out[i, : s * c, :n].reshape(s, c, n).astype(blocks[i].dtype))
    return tuple(outs)


# -------------------------- EquivariantLinear (JAX) ------------------------ #

class EquivariantLinearPallas:
    """Per-block Linear; bias only on invariant blocks (like metatensor-learn)."""
    # TODO(synk): metatensor Labels/out_properties metadata relabeling is pure
    # bookkeeping with no Pallas equivalent; blocks are plain arrays here.

    def __init__(self,
                 key: jax.Array,
                 num_keys: int,
                 invariant_key_idxs: Sequence[int],
                 in_features: Sequence[int],
                 out_features: Sequence[int],
                 bias: bool = True,
                 dtype=jnp.float32):
        assert len(in_features) == num_keys and len(out_features) == num_keys
        self.invariant_key_idxs = list(invariant_key_idxs)
        self.in_features = list(in_features)
        self.out_features = list(out_features)
        self.dtype = dtype

        # Padded packed-parameter layout (lane-dense, 128-multiple N; N tiled @512).
        K_pad = _round_up(max(in_features), 128)
        N_pad, _ = _choose_tile(max(out_features), cap=512, align=128)
        self.K_pad, self.N_pad = K_pad, N_pad

        # Original (out, in) torch-layout weights kept for reference checks.
        self.weights: List[jax.Array] = []
        self.biases: List[Optional[jax.Array]] = []

        w_packed = jnp.zeros((num_keys, K_pad, N_pad), dtype=dtype)   # (in, out), padded
        b_packed = jnp.zeros((num_keys, 1, N_pad), dtype=dtype)       # zero for covariant

        keys = jax.random.split(key, 2 * num_keys)
        for i in range(num_keys):
            fan_in = in_features[i]
            bound = 1.0 / (fan_in ** 0.5)  # torch.nn.Linear default init range
            w = jax.random.uniform(keys[2 * i], (out_features[i], fan_in),
                                   dtype=dtype, minval=-bound, maxval=bound)
            self.weights.append(w)
            w_packed = w_packed.at[i, :fan_in, :out_features[i]].set(w.T)
            if bias and (i in self.invariant_key_idxs):
                b = jax.random.uniform(keys[2 * i + 1], (out_features[i],),
                                       dtype=dtype, minval=-bound, maxval=bound)
                self.biases.append(b)
                b_packed = b_packed.at[i, 0, :out_features[i]].set(b)
            else:
                self.biases.append(None)  # covariant blocks: no bias, ever

        self._w_packed = w_packed
        self._b_packed = b_packed

    def __call__(self, blocks: List[jax.Array]) -> List[jax.Array]:
        shapes = tuple(tuple(int(d) for d in b.shape) for b in blocks)
        outs = _equivariant_forward(tuple(blocks), self._w_packed, self._b_packed,
                                    shapes=shapes,
                                    out_feats=tuple(self.out_features))
        return list(outs)


# ---------------------------------- main ----------------------------------- #

if __name__ == "__main__":
    key = jax.random.PRNGKey(0)
    k_blocks, k_params = jax.random.split(key)

    # Small TensorMap-like input: keys l = 0, 1, 2  ->  components 1, 3, 5.
    # Invariant block is key index 0 (l = 0); only it receives a bias.
    samples = 4
    component_dims = [1, 3, 5]
    in_features = [32, 16, 16]
    out_features = [64, 32, 32]
    invariant_key_idxs = [0]

    bkeys = jax.random.split(k_blocks, len(component_dims))
    blocks = [
        jax.random.normal(bkeys[i], (samples, component_dims[i], in_features[i]),
                          dtype=jnp.float32)
        for i in range(len(component_dims))
    ]

    model = EquivariantLinearPallas(
        k_params,
        num_keys=len(component_dims),
        invariant_key_idxs=invariant_key_idxs,
        in_features=in_features,
        out_features=out_features,
        bias=True,
    )

    out = model(blocks)
    out = [jax.block_until_ready(o) for o in out]

    # Reference check (plain JAX), same semantics as the per-block nn.Linear.
    ok = True
    for i, x in enumerate(blocks):
        ref = jnp.einsum("scf,of->sco", x, model.weights[i])
        if model.biases[i] is not None:
            ref = ref + model.biases[i]
        ok &= bool(jnp.allclose(out[i], ref, atol=1e-5, rtol=1e-5))
        ok &= out[i].shape == (samples, component_dims[i], out_features[i])

    if ok:
        print("KERNEL_OK")
    else:
        raise SystemExit("mismatch vs reference")
</pallas_src>

<mosaic_0001>
module attributes {stable_mosaic.version = 11 : i64} {
  func.func @_fused_linear_kernel(%arg0: i32, %arg1: i32, %arg2: i32, %arg3: memref<1x24x128xf32, #tpu.memory_space<vmem>>, %arg4: memref<1x128x128xf32, #tpu.memory_space<vmem>>, %arg5: memref<1x1x128xf32, #tpu.memory_space<vmem>>, %arg6: memref<1x24x128xf32, #tpu.memory_space<vmem>>) attributes {dimension_semantics = [#tpu.dimension_semantics<parallel>, #tpu.dimension_semantics<parallel>, #tpu.dimension_semantics<parallel>], iteration_bounds = array<i64: 3, 1, 1>, scalar_prefetch = 0 : i64, scratch_operands = 0 : i64, tpu.core_type = #tpu.core_type<tc>, window_params = [{transform_indices = @transform_0, window_bounds = array<i64: 1, 24, 128>}, {transform_indices = @transform_1, window_bounds = array<i64: 1, 128, 128>}, {transform_indices = @transform_2, window_bounds = array<i64: 1, 1, 128>}, {transform_indices = @transform_3, window_bounds = array<i64: 1, 24, 128>}]} {
    %c0 = arith.constant 0 : index
    %c0_0 = arith.constant 0 : index
    %c0_1 = arith.constant 0 : index
    %0 = vector.load %arg3[%c0, %c0_0, %c0_1] : memref<1x24x128xf32, #tpu.memory_space<vmem>>, vector<1x24x128xf32>
    %1 = vector.shape_cast %0 : vector<1x24x128xf32> to vector<24x128xf32>
    %c0_2 = arith.constant 0 : index
    %c0_3 = arith.constant 0 : index
    %c0_4 = arith.constant 0 : index
    %2 = vector.load %arg4[%c0_2, %c0_3, %c0_4] : memref<1x128x128xf32, #tpu.memory_space<vmem>>, vector<1x128x128xf32>
    %3 = vector.shape_cast %2 : vector<1x128x128xf32> to vector<128x128xf32>
    %cst = arith.constant dense<0.000000e+00> : vector<24x128xf32>
    %4 = tpu.matmul %1, %3, %cst {dimension_numbers = #tpu.dot_dimension_numbers<[1], [0], [0], [1], [0, 0, 1, 1], [], []>} : vector<24x128xf32>, vector<128x128xf32>, vector<24x128xf32> -> vector<24x128xf32>
    %c0_5 = arith.constant 0 : index
    %c0_6 = arith.constant 0 : index
    %c0_7 = arith.constant 0 : index
    %5 = vector.load %arg5[%c0_5, %c0_6, %c0_7] : memref<1x1x128xf32, #tpu.memory_space<vmem>>, vector<1x1x128xf32>
    %6 = vector.shape_cast %5 : vector<1x1x128xf32> to vector<1x128xf32>
    %7 = vector.broadcast %6 : vector<1x128xf32> to vector<24x128xf32>
    %8 = arith.addf %4, %7 : vector<24x128xf32>
    %c0_8 = arith.constant 0 : index
    %c0_9 = arith.constant 0 : index
    %c0_10 = arith.constant 0 : index
    %9 = vector.load %arg6[%c0_8, %c0_9, %c0_10] : memref<1x24x128xf32, #tpu.memory_space<vmem>>, vector<1x24x128xf32>
    %10 = vector.shape_cast %9 : vector<1x24x128xf32> to vector<24x128xf32>
    %11 = vector.shape_cast %8 : vector<24x128xf32> to vector<1x24x128xf32>
    tpu.vector_store %arg6[%c0_8, %c0_9, %c0_10], %11 {strides = array<i32>} : memref<1x24x128xf32, #tpu.memory_space<vmem>>, vector<1x24x128xf32>,
    return
  }
  func.func @transform_0(%arg0: i32, %arg1: i32, %arg2: i32) -> (i32, i32, i32) {
    %c0_i32 = arith.constant 0 : i32
    %c0_i32_0 = arith.constant 0 : i32
    return %arg0, %arg2, %c0_i32 : i32, i32, i32
  }
  func.func @transform_1(%arg0: i32, %arg1: i32, %arg2: i32) -> (i32, i32, i32) {
    %c0_i32 = arith.constant 0 : i32
    %c0_i32_0 = arith.constant 0 : i32
    return %arg0, %c0_i32, %arg1 : i32, i32, i32
  }
  func.func @transform_2(%arg0: i32, %arg1: i32, %arg2: i32) -> (i32, i32, i32) {
    %c0_i32 = arith.constant 0 : i32
    %c0_i32_0 = arith.constant 0 : i32
    return %arg0, %c0_i32, %arg1 : i32, i32, i32
  }
  func.func @transform_3(%arg0: i32, %arg1: i32, %arg2: i32) -> (i32, i32, i32) {
    %c0_i32 = arith.constant 0 : i32
    return %arg0, %arg2, %arg1 : i32, i32, i32
  }
}

</mosaic_0001>

<llo_original>
// kernel: squeeze.5
$region0: #{squeeze.5}
  %s0 = inlined_call_operand.vmem [shape: f32[1,20,32], index: 0, kind: input, shape index: {}]
  %s1 = inlined_call_operand.vmem [shape: f32[4,5,32], index: 1, kind: output, shape index: {}]
  %v2 = vld [vmem:[%s0] sm:$0xff]
  %vm3 = vcmask 261120
  %4 = vst.msk [vmem:[%s1] sm:$0x1f] %vm3, %v2
  %s5 = scalar_lea.vmem %s1, 3
  %6 = vst.msk [vmem:[%s5] sm:$0xe0] %vm3, %v2
  %s7 = scalar_lea.vmem %s0, 8
  %v8 = vld [vmem:[%s7] sm:$0xff]
  %vm9 = vcmask 261120
  %s10 = scalar_lea.vmem %s1, 11
  %11 = vst.msk [vmem:[%s10] sm:$0x3] %vm9, %v8
  %s12 = scalar_lea.vmem %s1, 14
  %13 = vst.msk [vmem:[%s12] sm:$0x7c] %vm9, %v8
  %s14 = scalar_lea.vmem %s1, 17
  %15 = vst.msk [vmem:[%s14] sm:$0x80] %vm9, %v8
  %s16 = scalar_lea.vmem %s0, 16
  %v17 = vld [vmem:[%s16] sm:$0xf]
  %vm18 = vcmask 261120
  %s19 = scalar_lea.vmem %s1, 25
  %20 = vst.msk [vmem:[%s19] sm:$0xf] %vm18, %v17

// kernel: squeeze.4
$region0: #{squeeze.4}
  %s0 = inlined_call_operand.vmem [shape: f32[1,12,32], index: 0, kind: input, shape index: {}]
  %s1 = inlined_call_operand.vmem [shape: f32[4,3,32], index: 1, kind: output, shape index: {}]
  $region1: #{squeeze.4} parent=0
    #allocation0 [shape = 'u8[16384]{0}', space=vmem, size = 0x4000, scoped, tag = 'scoped mem for output reshape']
    %v2 = vld [vmem:[%s0] sm:$0xff]
    %vm3 = vcmask 261120
    %4 = vst.msk [vmem:[#allocation0] sm:$0x7] %vm3, %v2
    %s5 = scalar_lea.vmem [#allocation0], 5
    %6 = vst.msk [vmem:[%s5] sm:$0x38] %vm3, %v2
    %s7 = scalar_lea.vmem [#allocation0], 10
    %8 = vst.msk [vmem:[%s7] sm:$0xc0] %vm3, %v2
    %s9 = scalar_lea.vmem %s0, 8
    %v10 = vld [vmem:[%s9] sm:$0xf]
    %vm11 = vcmask 261120
    %s12 = scalar_lea.vmem [#allocation0], 18
    %13 = vst.msk [vmem:[%s12] ss:$6 sm:$0x3] %vm11, %v10
    %s14 = scalar_lea.vmem [#allocation0], 23
    %15 = vst.msk [vmem:[%s14] sm:$0xc] %vm11, %v10
    %s17 = sshllo.u32 0, 4
    %v19 = vld [vmem:[#allocation0] sm:%s17]
    %s20 = sshllo.u32 0, 4
    %21 = vst [vmem:[%s1] sm:%s20] %v19
    %s22 = scalar_lea.vmem [#allocation0], 8
    %v23 = vld [vmem:[%s22] sm:%s17]
    %s24 = sshllo.u32 0, 4
    %s25 = scalar_lea.vmem %s1, 4
    %26 = vst [vmem:[%s25] sm:%s24] %v23
    %s27 = scalar_lea.vmem [#allocation0], 16
    %v28 = vld [vmem:[%s27] sm:%s17]
    %s29 = sshllo.u32 0, 4
    %s30 = smul.addr 4, 2
    %s31 = scalar_lea.vmem %s1, %s30
    %32 = vst [vmem:[%s31] sm:%s29] %v28
    %s33 = scalar_lea.vmem [#allocation0], 24
    %v34 = vld [vmem:[%s33] sm:%s17]
    %s35 = sshllo.u32 0, 4
    %s36 = smul.addr 4, 3
    %s37 = scalar_lea.vmem %s1, %s36
    %38 = vst [vmem:[%s37] sm:%s35] %v34

// kernel: _equivariant_forward.1
$region0: #{_equivariant_forward.1}
  #allocation0 [shape = 'u32[]', space=smem, size = 0x4, offset = 0x4, fixed_abs, tag = 'smem constant byte address 0x4 - core index']
  #allocation1 [shape = 'u32[144,128]{1,0:T(1,128)}', space=vmem, size = 0x12000, scoped, tag = 'internal scratch']
  %s0 = inlined_call_operand.vmem [shape: f32[3,24,128], index: 0, kind: input, shape index: {}]
  %s1 = inlined_call_operand.hbm [shape: f32[3,128,128], index: 1, kind: input, shape index: {}]
  %s2 = inlined_call_operand.vmem [shape: f32[3,1,128], index: 2, kind: input, shape index: {}]
  %s3 = inlined_call_operand.vmem [shape: f32[3,24,128], index: 3, kind: output, shape index: {}]
  %s4 = sld [smem:[#allocation0]]
  $region49: #{_equivariant_forward.1} parent=0
    _
  %s6 = ssub.s32 1, %s4
  %s7 = scalar_select 0, %s6, %s4
  $region1: #{_equivariant_forward.1} parent=0
    #allocation2 [shape = 'u8[131072]{0}', space=vmem, size = 0x20000, scoped, tag = 'input window, operand 1']
    #allocation3 [shape = 's32[2]{0}', space=sflag, size = 0x8, scoped, tag = 'scoped memory for _equivariant_forward.1']
    %8 = vsyncpa [#allocation3], 0
    %s9 = scalar_lea.sflag [#allocation3], 1
    %10 = vsyncpa %s9, 0
    loop: start=0, step=1, limit=5
    $region2: #{_equivariant_forward.1} parent=1 // loop_pre_header
      _
    $region3: #{_equivariant_forward.1} parent=1 // loop_header
      %s12 = sphi 0, %s16
      %p13 = scmp.ge.s32.totalorder %s12, 5
      %s19 = sphi 0, %s38
      %s20 = sphi 0, %s34
      %s21 = sphi 0, %s30
      %s22 = sphi 0, %s19
      %s23 = sphi 0, %s20
      %s24 = sphi 0, %s21
      %s25 = sphi 0, %s22
      %s26 = sphi 0, %s23
      %s27 = sphi 0, %s24
      %s43 = sphi 0, %s45
      %s46 = sphi 0, %s43
      %s47 = sphi 0, %s46
      %s63 = sphi 0, %s47
      %s71 = sphi 0, %s73
      %s74 = sphi 0, %s71
      %s75 = sphi 0, %s74
      %s91 = sphi 0, %s75
      %s99 = sphi 0, %s101
      %s102 = sphi 0, %s99
      %s103 = sphi 0, %s102
      %s119 = sphi 0, %s103
      %s129 = sphi 0, %s131
      %s132 = sphi 0, %s129
      %s133 = sphi 0, %s132
      %s149 = sphi 0, %s133
    $region4: #{_equivariant_forward.1} parent=1 // loop_header_branch
      %15 = sbr.rel (%p13) target = $region8
    $region5: #{_equivariant_forward.1} parent=1 // loop_body
      %s17 = ssub.s32 %s12, 1
      %s18 = ssub.s32 %s12, 2
      %s28 = sadd.s32 1, %s21
      %p29 = scmp.ge.s32.totalorder %s28, 1
      %s30 = scalar_select %p29, 0, %s28
      %s31 = sadd.s32 1, %s20
      %s32 = scalar_select %p29, %s31, %s20
      %p33 = scmp.ge.s32.totalorder %s32, 1
      %s34 = scalar_select %p33, 0, %s32
      %s35 = sadd.s32 1, %s19
      %s36 = scalar_select %p33, %s35, %s19
      %p37 = scmp.ge.s32.totalorder %s36, 3
      %s38 = scalar_select %p37, 0, %s36
      %s39 = ssub.s32 %s19, %s38
      %s40 = ssub.s32 %s21, %s30
      %s41 = sor.u32 %s39, %s40
      %p42 = scmp.eq.s32.totalorder %s41, 0
      %s44 = sadd.s32 %s43, 1
      %s45 = scalar_select %p42, %s43, %s44
      %p48 = pneg %p42
      %p49 = scmp.eq.s32.totalorder %s12, 2
      %p50 = por %p48, %p49
      %p51 = scmp.ne.s32.totalorder %s43, %s46
      %p52 = scmp.eq.s32.totalorder %s12, 0
      %p53 = por %p51, %p52
      %p54 = scmp.ne.s32.totalorder %s43, %s46
      %p55 = scmp.eq.s32.totalorder %s17, 2
      %p56 = por %p54, %p55
      %p57 = scmp.ne.s32.totalorder %s46, %s47
      %p58 = scmp.eq.s32.totalorder %s17, 0
      %p59 = por %p57, %p58
      %p60 = scmp.ne.s32.totalorder %s46, %s47
      %p61 = scmp.eq.s32.totalorder %s18, 2
      %p62 = por %p60, %p61
      %p64 = scmp.ne.s32.totalorder %s47, %s63
      %p65 = scmp.eq.s32.totalorder %s18, 0
      %p66 = por %p64, %p65
      %s67 = ssub.s32 %s19, %s38
      %s68 = ssub.s32 %s20, %s34
      %s69 = sor.u32 %s67, %s68
      %p70 = scmp.eq.s32.totalorder %s69, 0
      %s72 = sadd.s32 %s71, 1
      %s73 = scalar_select %p70, %s71, %s72
      %p76 = pneg %p70
      %p77 = scmp.eq.s32.totalorder %s12, 2
      %p78 = por %p76, %p77
      %p79 = scmp.ne.s32.totalorder %s71, %s74
      %p80 = scmp.eq.s32.totalorder %s12, 0
      %p81 = por %p79, %p80
      %p82 = scmp.ne.s32.totalorder %s71, %s74
      %p83 = scmp.eq.s32.totalorder %s17, 2
      %p84 = por %p82, %p83
      %p85 = scmp.ne.s32.totalorder %s74, %s75
      %p86 = scmp.eq.s32.totalorder %s17, 0
      %p87 = por %p85, %p86
      %p88 = scmp.ne.s32.totalorder %s74, %s75
      %p89 = scmp.eq.s32.totalorder %s18, 2
      %p90 = por %p88, %p89
      %p92 = scmp.ne.s32.totalorder %s75, %s91
      %p93 = scmp.eq.s32.totalorder %s18, 0
      %p94 = por %p92, %p93
      %s95 = ssub.s32 %s19, %s38
      %s96 = ssub.s32 %s20, %s34
      %s97 = sor.u32 %s95, %s96
      %p98 = scmp.eq.s32.totalorder %s97, 0
      %s100 = sadd.s32 %s99, 1
      %s101 = scalar_select %p98, %s99, %s100
      %p104 = pneg %p98
      %p105 = scmp.eq.s32.totalorder %s12, 2
      %p106 = por %p104, %p105
      %p107 = scmp.ne.s32.totalorder %s99, %s102
      %p108 = scmp.eq.s32.totalorder %s12, 0
      %p109 = por %p107, %p108
      %p110 = scmp.ne.s32.totalorder %s99, %s102
      %p111 = scmp.eq.s32.totalorder %s17, 2
      %p112 = por %p110, %p111
      %p113 = scmp.ne.s32.totalorder %s102, %s103
      %p114 = scmp.eq.s32.totalorder %s17, 0
      %p115 = por %p113, %p114
      %p116 = scmp.ne.s32.totalorder %s102, %s103
      %p117 = scmp.eq.s32.totalorder %s18, 2
      %p118 = por %p116, %p117
      %p120 = scmp.ne.s32.totalorder %s103, %s119
      %p121 = scmp.eq.s32.totalorder %s18, 0
      %p122 = por %p120, %p121
      %s123 = ssub.s32 %s19, %s38
      %s124 = ssub.s32 %s21, %s30
      %s125 = sor.u32 %s123, %s124
      %s126 = ssub.s32 %s20, %s34
      %s127 = sor.u32 %s125, %s126
      %p128 = scmp.eq.s32.totalorder %s127, 0
      %s130 = sadd.s32 %s129, 1
      %s131 = scalar_select %p128, %s129, %s130
      %p134 = pneg %p128
      %p135 = scmp.eq.s32.totalorder %s12, 2
      %p136 = por %p134, %p135
      %p137 = scmp.ne.s32.totalorder %s129, %s132
      %p138 = scmp.eq.s32.totalorder %s12, 0
      %p139 = por %p137, %p138
      %p140 = scmp.ne.s32.totalorder %s129, %s132
      %p141 = scmp.eq.s32.totalorder %s17, 2
      %p142 = por %p140, %p141
      %p143 = scmp.ne.s32.totalorder %s132, %s133
      %p144 = scmp.eq.s32.totalorder %s17, 0
      %p145 = por %p143, %p144
      %p146 = scmp.ne.s32.totalorder %s132, %s133
      %p147 = scmp.eq.s32.totalorder %s18, 2
      %p148 = por %p146, %p147
      %p150 = scmp.ne.s32.totalorder %s133, %s149
      %p151 = scmp.eq.s32.totalorder %s18, 0
      %p152 = por %p150, %p151
      %p153 = scmp.le.s32.totalorder 1, %s12
      %p154 = scmp.lt.s32.totalorder %s12, 4
      %p155 = pnand %p153, %p154
      %p156 = pneg %p155
      // Predicated region
      $region9: #{_equivariant_forward.1} parent=5 // pred_check
        _
      $region10: #{_equivariant_forward.1} parent=5 // pred_check_branch
        %158 = sbr.rel (%p155) target = $region12
      $region11: #{_equivariant_forward.1} parent=5 // pred_region
        %s159 = ssub.s32 %s12, 1
      $region12: #{_equivariant_forward.1} parent=5 // pred_fallthru
        _
      %p160 = scmp.lt.s32.totalorder %s12, 3
      // Predicated region
      $region13: #{_equivariant_forward.1} parent=5 // pred_check
        %p161 = pneg %p160
      $region14: #{_equivariant_forward.1} parent=5 // pred_check_branch
        %163 = sbr.rel (%p161) target = $region16
      $region15: #{_equivariant_forward.1} parent=5 // pred_region
        // Predicated region
        $region17: #{_equivariant_forward.1} parent=15 // pred_check
          %p164 = pneg %p53
        $region18: #{_equivariant_forward.1} parent=15 // pred_check_branch
          %166 = sbr.rel (%p164) target = $region20
        $region19: #{_equivariant_forward.1} parent=15 // pred_region
          %s167 = smul.u32 3, %s21
          %p168 = scmp.lt.s32.totalorder %s19, 2
          %s169 = scalar_select %p168, %s19, 2
          %p170 = scmp.lt.s32.totalorder %s167, 2
          %s171 = scalar_select %p170, %s167, 2
          %s172 = smul.addr %s169, 3
          %s173 = sadd.s32 %s171, %s172
          %s174 = smul.addr %s173, 8
          %s175 = scalar_lea.vmem %s0, %s174
          %s176 = smul.u32 3, %s21
        $region20: #{_equivariant_forward.1} parent=15 // pred_fallthru
          _
        // Predicated region
        $region21: #{_equivariant_forward.1} parent=15 // pred_check
          %p177 = pneg %p81
        $region22: #{_equivariant_forward.1} parent=15 // pred_check_branch
          %179 = sbr.rel (%p177) target = $region24
        $region23: #{_equivariant_forward.1} parent=15 // pred_region
          %s180 = sand.u32 %s71, 1
          %s181 = scalar_lea.sflag [#allocation3], %s180
          %s182 = sand.u32 %s71, 1
          %s183 = smul.addr %s182, 128
          %s184 = scalar_lea.vmem [#allocation2], %s183
          %s186 = ssub.s32 2048, 2048
          %187 = vsyncadd %s181, %s186
          %s188 = smul.addr %s19, 16
          %s189 = sadd.s32 %s20, %s188
          %s190 = smul.addr %s189, 128
          %s191 = scalar_lea.hbm %s1, %s190
          %s192 = sshll.u32 %s184, 4
          %s193 = int_to_ptr.vmem [resolvable:$true] %s192
          %198 = dma.hbm_to_vmem [thread:$0]  %s191, 2048, %s193, %s181, 128, 128, 8
        $region24: #{_equivariant_forward.1} parent=15 // pred_fallthru
          _
        // Predicated region
        $region25: #{_equivariant_forward.1} parent=15 // pred_check
          %p199 = pneg %p109
        $region26: #{_equivariant_forward.1} parent=15 // pred_check_branch
          %201 = sbr.rel (%p199) target = $region28
        $region27: #{_equivariant_forward.1} parent=15 // pred_region
          %p202 = scmp.lt.s32.totalorder %s19, 2
          %s203 = scalar_select %p202, %s19, 2
          %p204 = scmp.lt.s32.totalorder %s20, 0
          %s205 = scalar_select %p204, %s20, 0
          %s206 = sadd.s32 %s205, %s203
          %s207 = scalar_lea.vmem %s2, %s206
        $region28: #{_equivariant_forward.1} parent=15 // pred_fallthru
          _
      $region16: #{_equivariant_forward.1} parent=5 // pred_fallthru
        _
      %p208 = scmp.le.s32.totalorder 1, %s12
      %p209 = scmp.lt.s32.totalorder %s12, 4
      %p210 = pnand %p208, %p209
      %p211 = pneg %p210
      // Predicated region
      $region29: #{_equivariant_forward.1} parent=5 // pred_check
        _
      $region30: #{_equivariant_forward.1} parent=5 // pred_check_branch
        %213 = sbr.rel (%p210) target = $region32
      $region31: #{_equivariant_forward.1} parent=5 // pred_region
        %s214 = ssub.s32 %s12, 1
        %s215 = sand.u32 %s74, 1
        %s216 = scalar_lea.sflag [#allocation3], %s215
        %s217 = sand.u32 %s74, 1
        %s218 = smul.addr %s217, 128
        %s219 = scalar_lea.vmem [#allocation2], %s218
        // Predicated region
        $region33: #{_equivariant_forward.1} parent=31 // pred_check
          %p220 = pneg %p87
        $region34: #{_equivariant_forward.1} parent=31 // pred_check_branch
          %222 = sbr.rel (%p220) target = $region36
        $region35: #{_equivariant_forward.1} parent=31 // pred_region
          %223 = dma.done %s216, 2048
        $region36: #{_equivariant_forward.1} parent=31 // pred_fallthru
          _
        %s224 = smul.u32 3, %s24
        %p225 = scmp.lt.s32.totalorder %s22, 2
        %s226 = scalar_select %p225, %s22, 2
        %p227 = scmp.lt.s32.totalorder %s224, 2
        %s228 = scalar_select %p227, %s224, 2
        %s229 = smul.addr %s226, 3
        %s230 = sadd.s32 %s228, %s229
        %s231 = smul.addr %s230, 8
        %s232 = scalar_lea.vmem %s0, %s231
        %p233 = pneg %p59
        %p234 = pneg %p56
        %s235 = sand.u32 %s74, 1
        %s236 = scalar_lea.sflag [#allocation3], %s235
        %s237 = sand.u32 %s74, 1
        %s238 = smul.addr %s237, 128
        %s239 = scalar_lea.vmem [#allocation2], %s238
        %p240 = pneg %p87
        %p241 = pneg %p84
        %p242 = scmp.lt.s32.totalorder %s22, 2
        %s243 = scalar_select %p242, %s22, 2
        %p244 = scmp.lt.s32.totalorder %s23, 0
        %s245 = scalar_select %p244, %s23, 0
        %s246 = sadd.s32 %s245, %s243
        %s247 = scalar_lea.vmem %s2, %s246
        %p248 = pneg %p115
        %p249 = pneg %p112
        %p250 = pneg %p145
        %p251 = pneg %p142
        %s252 = smul.u32 3, %s24
        %p253 = scmp.lt.s32.totalorder %s22, 2
        %s254 = scalar_select %p253, %s22, 2
        %p255 = scmp.lt.s32.totalorder %s252, 2
        %s256 = scalar_select %p255, %s252, 2
        %p257 = scmp.lt.s32.totalorder %s23, 0
        %s258 = scalar_select %p257, %s23, 0
        %s259 = sadd.s32 %s258, %s256
        %s260 = smul.addr %s254, 3
        %s261 = sadd.s32 %s259, %s260
        %s262 = smul.addr %s261, 8
        %s263 = scalar_lea.vmem %s3, %s262
        %s264 = smul.u32 3, %s24
        %p265 = scmp.lt.s32.totalorder %s22, 2
        %s266 = scalar_select %p265, %s22, 2
        %p267 = scmp.lt.s32.totalorder %s264, 2
        %s268 = scalar_select %p267, %s264, 2
        %s269 = smul.addr %s266, 3
        %s270 = sadd.s32 %s268, %s269
        %s271 = smul.addr %s270, 8
        %s272 = scalar_lea.vmem %s0, %s271
        %s273 = smul.u32 3, %s24
        %p274 = scmp.lt.s32.totalorder %s22, 2
        %s275 = scalar_select %p274, %s22, 2
        %p276 = scmp.lt.s32.totalorder %s23, 0
        %s277 = scalar_select %p276, %s23, 0
        %s278 = sadd.s32 %s277, %s275
        %s279 = scalar_lea.vmem %s2, %s278
        %s280 = smul.u32 3, %s24
        %p281 = scmp.lt.s32.totalorder %s22, 2
        %s282 = scalar_select %p281, %s22, 2
        %p283 = scmp.lt.s32.totalorder %s280, 2
        %s284 = scalar_select %p283, %s280, 2
        %p285 = scmp.lt.s32.totalorder %s23, 0
        %s286 = scalar_select %p285, %s23, 0
        %s287 = sadd.s32 %s286, %s284
        %s288 = smul.addr %s282, 3
        %s289 = sadd.s32 %s287, %s288
        %s290 = smul.addr %s289, 8
        %s291 = scalar_lea.vmem %s3, %s290
        %s292 = smul.u32 3, %s24
        %v293 = vld [vmem:[%s272] sm:$0xff]
        %v294 = vld [vmem:[%s272 + $0x8] sm:$0xff]
        %v295 = vld [vmem:[%s272 + $0x10] sm:$0xff]
        %v296 = vld [vmem:[%s219] sm:$0xff]
        %v297 = vld [vmem:[%s219 + $0x8] sm:$0xff]
        %v298 = vld [vmem:[%s219 + $0x10] sm:$0xff]
        %v299 = vld [vmem:[%s219 + $0x18] sm:$0xff]
        %v300 = vld [vmem:[%s219 + $0x20] sm:$0xff]
        %v301 = vld [vmem:[%s219 + $0x28] sm:$0xff]
        %v302 = vld [vmem:[%s219 + $0x30] sm:$0xff]
        %v303 = vld [vmem:[%s219 + $0x38] sm:$0xff]
        %v304 = vld [vmem:[%s219 + $0x40] sm:$0xff]
        %v305 = vld [vmem:[%s219 + $0x48] sm:$0xff]
        %v306 = vld [vmem:[%s219 + $0x50] sm:$0xff]
        %v307 = vld [vmem:[%s219 + $0x58] sm:$0xff]
        %v308 = vld [vmem:[%s219 + $0x60] sm:$0xff]
        %v309 = vld [vmem:[%s219 + $0x68] sm:$0xff]
        %v310 = vld [vmem:[%s219 + $0x70] sm:$0xff]
        %v311 = vld [vmem:[%s219 + $0x78] sm:$0xff]
        %v312 = vld [vmem:[%s279] sm:$0x1]
        %v314 = vlaneseq
        %v315 = vshrl.u32 %v314, 7
        %v316 = vsub.s32 0, %v315
        %v317 = vrot.slane %v312, %v316
        %319 = vmatprep.subr.mxu0 0.0
        %320 = vmatpush1.msra.mxu0 %v296
        %321 = vmatprep.subr.mxu0 0.0
        %322 = vmatpush1.msra.mxu0 %v297
        %323 = vmatprep.subr.mxu0 0.0
        %324 = vmatpush1.msra.mxu0 %v298
        %325 = vmatprep.subr.mxu0 0.0
        %326 = vmatpush1.msra.mxu0 %v299
        %327 = vmatprep.subr.mxu0 0.0
        %328 = vmatpush1.msra.mxu0 %v300
        %329 = vmatprep.subr.mxu0 0.0
        %330 = vmatpush1.msra.mxu0 %v301
        %331 = vmatprep.subr.mxu0 0.0
        %332 = vmatpush1.msra.mxu0 %v302
        %333 = vmatprep.subr.mxu0 0.0
        %334 = vmatpush1.msra.mxu0 %v303
        %335 = vmatprep.subr.mxu0 0.0
        %336 = vmatpush1.msra.mxu0 %v304
        %337 = vmatprep.subr.mxu0 0.0
        %338 = vmatpush1.msra.mxu0 %v305
        %339 = vmatprep.subr.mxu0 0.0
        %340 = vmatpush1.msra.mxu0 %v306
        %341 = vmatprep.subr.mxu0 0.0
        %342 = vmatpush1.msra.mxu0 %v307
        %343 = vmatprep.subr.mxu0 0.0
        %344 = vmatpush1.msra.mxu0 %v308
        %345 = vmatprep.subr.mxu0 0.0
        %346 = vmatpush1.msra.mxu0 %v309
        %347 = vmatprep.subr.mxu0 0.0
        %348 = vmatpush1.msra.mxu0 %v310
        %349 = vmatprep.subr.mxu0 0.0
        %350 = vmatpush1.msra.mxu0 %v311
        %351 = vmatprep.subr.mxu0 0.0
        %352 = vmatpush1.msra.mxu0 0.0
        %353 = vmatprep.subr.mxu0 0.0
        %354 = vmatpush1.msra.mxu0 0.0
        %355 = vmatprep.subr.mxu0 0.0
        %356 = vmatpush1.msra.mxu0 0.0
        %357 = vmatprep.subr.mxu0 0.0
        %358 = vmatpush1.msra.mxu0 0.0
        %359 = vmatprep.subr.mxu0 0.0
        %360 = vmatpush1.msra.mxu0 0.0
        %361 = vmatprep.subr.mxu0 0.0
        %362 = vmatpush1.msra.mxu0 0.0
        %363 = vmatprep.subr.mxu0 0.0
        %364 = vmatpush1.msra.mxu0 0.0
        %365 = vmatprep.subr.mxu0 0.0
        %366 = vmatpush1.msra.mxu0 0.0
        %367 = vmatprep.subr.mxu0 0.0
        %368 = vmatpush1.msra.mxu0 0.0
        %369 = vmatprep.subr.mxu0 0.0
        %370 = vmatpush1.msra.mxu0 0.0
        %371 = vmatprep.subr.mxu0 0.0
        %372 = vmatpush1.msra.mxu0 0.0
        %373 = vmatprep.subr.mxu0 0.0
        %374 = vmatpush1.msra.mxu0 0.0
        %375 = vmatprep.subr.mxu0 0.0
        %376 = vmatpush1.msra.mxu0 0.0
        %377 = vmatprep.subr.mxu0 0.0
        %378 = vmatpush1.msra.mxu0 0.0
        %379 = vmatprep.subr.mxu0 0.0
        %380 = vmatpush1.msra.mxu0 0.0
        %381 = vmatprep.subr.mxu0 0.0
        %382 = vmatpush1.msra.mxu0 0.0
        %383 = vmatprep.mubr.f32.mxu0 0.0
        %384 = vmatmul.mubr.f32.gmra.mrb[0].mxu0 %v293
        %v385 = vpop.f32.mrb[0].mxu0
        %v386 = vadd.f32 %v317, %v385
        %v387 = vpop.f32.mrb[0].mxu0
        %388 = vmatprep.mubr.f32.mxu0 0.0
        %389 = vmatmul.mubr.f32.gmra.mrb[0].mxu0 %v294
        %v390 = vpop.f32.mrb[0].mxu0
        %v391 = vadd.f32 %v317, %v390
        %v392 = vpop.f32.mrb[0].mxu0
        %393 = vmatprep.mubr.f32.mxu0 0.0
        %394 = vmatmul.mubr.f32.gmra.mrb[0].mxu0 %v295
        %v395 = vpop.f32.mrb[0].mxu0
        %v396 = vadd.f32 %v317, %v395
        %v397 = vpop.f32.mrb[0].mxu0
        %398 = vdwg.mxu0
        %399 = vst [vmem:[%s291] sm:$0xff] %v386
        %400 = vst [vmem:[%s291 + $0x8] sm:$0xff] %v391
        %401 = vst [vmem:[%s291 + $0x10] sm:$0xff] %v396
        %s402 = smul.u32 3, %s24
        %p403 = scmp.lt.s32.totalorder %s22, 2
        %s404 = scalar_select %p403, %s22, 2
        %p405 = scmp.lt.s32.totalorder %s402, 2
        %s406 = scalar_select %p405, %s402, 2
        %p407 = scmp.lt.s32.totalorder %s23, 0
        %s408 = scalar_select %p407, %s23, 0
        %s409 = sadd.s32 %s408, %s406
        %s410 = smul.addr %s404, 3
        %s411 = sadd.s32 %s409, %s410
        %s412 = smul.addr %s411, 8
        %s413 = scalar_lea.vmem %s3, %s412
        // Predicated region
        $region37: #{_equivariant_forward.1} parent=31 // pred_check
          %p414 = pneg %p142
        $region38: #{_equivariant_forward.1} parent=31 // pred_check_branch
          %416 = sbr.rel (%p414) target = $region40
        $region39: #{_equivariant_forward.1} parent=31 // pred_region
          %s417 = smul.u32 3, %s24
        $region40: #{_equivariant_forward.1} parent=31 // pred_fallthru
          _
      $region32: #{_equivariant_forward.1} parent=5 // pred_fallthru
        _
      %p418 = scmp.le.s32.totalorder 2, %s12
      // Predicated region
      $region41: #{_equivariant_forward.1} parent=5 // pred_check
        %p419 = pneg %p418
      $region42: #{_equivariant_forward.1} parent=5 // pred_check_branch
        %421 = sbr.rel (%p419) target = $region44
      $region43: #{_equivariant_forward.1} parent=5 // pred_region
        %s422 = ssub.s32 %s12, 2
        // Predicated region
        $region45: #{_equivariant_forward.1} parent=43 // pred_check
          %p423 = pneg %p148
        $region46: #{_equivariant_forward.1} parent=43 // pred_check_branch
          %425 = sbr.rel (%p423) target = $region48
        $region47: #{_equivariant_forward.1} parent=43 // pred_region
          %s426 = smul.u32 3, %s27
          %p427 = scmp.lt.s32.totalorder %s25, 2
          %s428 = scalar_select %p427, %s25, 2
          %p429 = scmp.lt.s32.totalorder %s426, 2
          %s430 = scalar_select %p429, %s426, 2
          %p431 = scmp.lt.s32.totalorder %s26, 0
          %s432 = scalar_select %p431, %s26, 0
          %s433 = sadd.s32 %s432, %s430
          %s434 = smul.addr %s428, 3
          %s435 = sadd.s32 %s433, %s434
          %s436 = smul.addr %s435, 8
          %s437 = scalar_lea.vmem %s3, %s436
        $region48: #{_equivariant_forward.1} parent=43 // pred_fallthru
          _
      $region44: #{_equivariant_forward.1} parent=5 // pred_fallthru
        _
    $region6: #{_equivariant_forward.1} parent=1 // loop_footer
      %s16 = sadd.s32 1, %s12
    $region7: #{_equivariant_forward.1} parent=1 // loop_footer_branch
      %11 = sbr.rel target = $region3
    $region8: #{_equivariant_forward.1} parent=1 // loop_exit
      _
    %438 = vsyncpa [#allocation3], 1
    %s439 = scalar_lea.sflag [#allocation3], 1
    %440 = vsyncpa %s439, 1

</llo_original>
